<compile_context>
chip_gen: v5e
topology: v5e:2x2
jax: 0.10.0
libtpu: 0.0.40
codegen_flags: <defaults>
</compile_context>

<pallas_src>
import math

import jax
import jax.numpy as jnp
import numpy as np
from jax import lax
from jax.experimental import pallas as pl
from jax.experimental.pallas import tpu as pltpu

CONV2_K = 13
PAD = (CONV2_K - 1) // 2       # 'same' padding for an odd kernel, stride 1
OC1 = 10                       # conv1 out channels
OC2 = 50                       # conv2 out channels
HID = 100                      # dense1 hidden size
HID_PAD = 128                  # padded to one full lane tile


def _scaled_tanh(x):
    return 1.7159 * jnp.tanh((2.0 / 3.0) * x)


def _sigmoid(x):
    # keep the divide off the VALU: EUP reciprocal of (1 + e^-x)
    return pl.reciprocal(1.0 + jnp.exp(-x), approx=False)


# --------------------------- Kernel A: conv1 + conv2 -------------------------
def conv_kernel(x_ref, w1t_ref, b1_ref, w2m_ref, b2_ref, y2_ref, col_ref):
    BT, S, C = x_ref.shape
    w1t = w1t_ref[...]                       # (C, 10)
    b1 = b1_ref[...]                         # (1, 10)
    zpad = jnp.zeros((PAD, OC1), jnp.float32)

    # Build the im2col buffer for the whole batch tile (halo handled per sample).
    for b in range(BT):                      # BT is small & static -> unrolled
        xb = x_ref[b]                        # (S, C)  time-major
        y1 = _scaled_tanh(
            jnp.dot(xb, w1t, preferred_element_type=jnp.float32) + b1)      # (S, 10)
        padded = jnp.concatenate([zpad, y1, zpad], axis=0)                   # (S+12, 10)
        col = jnp.concatenate([padded[k:k + S, :] for k in range(CONV2_K)],
                              axis=1)                                        # (S, 130)
        col_ref[b * S:(b + 1) * S, :] = col

    # conv2 for the whole tile: ONE (BT*S, 130) @ (130, 50) MXU matmul.
    y2 = jnp.dot(col_ref[...], w2m_ref[...],
                 preferred_element_type=jnp.float32) + b2_ref[...]           # (BT*S, 50)
    y2_ref[...] = _scaled_tanh(y2)


# --------------------------- Kernel B: dense1 + dense2 -----------------------
def dense_kernel(flat_ref, w3_ref, bd1_ref, wd2_ref, bd2_ref, out_ref):
    # dense1: single (B_tile, 50*S) @ (50*S, 128) matmul (hidden padded to 128).
    h = _sigmoid(jnp.dot(flat_ref[...], w3_ref[...],
                         preferred_element_type=jnp.float32) + bd1_ref[...])
    # dense2: padded hidden columns hit zero rows of wd2, so they are inert.
    out_ref[...] = _sigmoid(jnp.dot(h, wd2_ref[...],
                                    preferred_element_type=jnp.float32) + bd2_ref[...])


def _resident_spec(shape):
    """Whole-array block with a constant index map (stays VMEM-resident)."""
    nd = len(shape)
    return pl.BlockSpec(shape, lambda i, _n=nd: (0,) * _n)


def cnn1_forward(x, kernel_params, *, conv_batch_tile=None, dense_batch_tile=None):
    """x: (B, Samples, Chans) float32 -- same layout as the PyTorch module input."""
    w1t, b1, w2m, b2, w3flat, bd1p, wd2p, bd2p = kernel_params
    B, S, C = x.shape

    # ---------------- conv stage ----------------
    bt = conv_batch_tile or (B if B <= 8 else 8)
    bp = ((B + bt - 1) // bt) * bt
    xp = jnp.pad(x, ((0, bp - B), (0, 0), (0, 0))) if bp != B else x

    y2 = pl.pallas_call(
        conv_kernel,
        out_shape=jax.ShapeDtypeStruct((bp * S, OC2), jnp.float32),
        grid_spec=pltpu.PrefetchScalarGridSpec(
            num_scalar_prefetch=0,
            grid=(bp // bt,),
            in_specs=[
                pl.BlockSpec((bt, S, C), lambda i: (i, 0, 0)),
                _resident_spec(w1t.shape),
                _resident_spec(b1.shape),
                _resident_spec(w2m.shape),
                _resident_spec(b2.shape),
            ],
            out_specs=pl.BlockSpec((bt * S, OC2), lambda i: (i, 0)),
            scratch_shapes=[pltpu.VMEM((bt * S, CONV2_K * OC1), jnp.float32)],
        ),
        compiler_params=pltpu.CompilerParams(
            dimension_semantics=("parallel",),
            vmem_limit_bytes=32 * 1024 * 1024,
        ),
    )(xp, w1t, b1, w2m, b2)

    # torch Flatten: free row-major reshape (w3flat was pre-permuted to t*50+c order).
    flat = y2.reshape(bp, S * OC2)

    # ---------------- dense stage ----------------
    btd = dense_batch_tile or (bp if bp <= 128 else 128)
    bq = ((bp + btd - 1) // btd) * btd
    flatq = jnp.pad(flat, ((0, bq - bp), (0, 0))) if bq != bp else flat

    out = pl.pallas_call(
        dense_kernel,
        out_shape=jax.ShapeDtypeStruct((bq, 2), jnp.float32),
        grid_spec=pltpu.PrefetchScalarGridSpec(
            num_scalar_prefetch=0,
            grid=(bq // btd,),
            in_specs=[
                pl.BlockSpec((btd, S * OC2), lambda i: (i, 0)),
                _resident_spec(w3flat.shape),
                _resident_spec(bd1p.shape),
                _resident_spec(wd2p.shape),
                _resident_spec(bd2p.shape),
            ],
            out_specs=pl.BlockSpec((btd, 2), lambda i: (i, 0)),
        ),
        compiler_params=pltpu.CompilerParams(
            dimension_semantics=("parallel",),
            vmem_limit_bytes=32 * 1024 * 1024,
        ),
    )(flatq, w3flat, bd1p, wd2p, bd2p)
    # TODO(synk): for very large Samples, tile dense1's 50*S contraction over an
    # extra "arbitrary" grid axis so w3flat fits v5e/v7x scoped VMEM budgets.
    return out[:B]


def init_params(key, chans, samples):
    """Deterministic init mirroring CNN1.__init__ shapes (cecotti normal for convs)."""
    k1, k2, k3, k4, k5, k6 = jax.random.split(key, 6)
    # conv1: (10, Chans, 1); cecotti std = 1/fan_in, fan_in = Chans * 1
    w1_full = jax.random.normal(k1, (OC1, chans, 1), jnp.float32) * (1.0 / chans)
    b1_full = jnp.zeros((OC1,), jnp.float32)
    # conv2: (50, 10, 13); fan_in = 10 * 13
    w2_full = jax.random.normal(k2, (OC2, OC1, CONV2_K), jnp.float32) * (1.0 / (OC1 * CONV2_K))
    b2_full = jnp.zeros((OC2,), jnp.float32)
    # dense layers: torch default Linear init (uniform +- 1/sqrt(fan_in))
    fin1 = OC2 * samples
    bound1 = 1.0 / math.sqrt(fin1)
    wd1 = jax.random.uniform(k3, (HID, fin1), jnp.float32, -bound1, bound1)
    bd1 = jax.random.uniform(k4, (HID,), jnp.float32, -bound1, bound1)
    bound2 = 1.0 / math.sqrt(float(HID))
    wd2 = jax.random.uniform(k5, (2, HID), jnp.float32, -bound2, bound2)
    bd2 = jax.random.uniform(k6, (2,), jnp.float32, -bound2, bound2)
    return (w1_full, b1_full, w2_full, b2_full, wd1, bd1, wd2, bd2)


def pack_params_for_kernel(raw, samples):
    """Plain-JAX glue: reshape/transpose/pad weights into the kernel's layouts."""
    w1_full, b1_full, w2_full, b2_full, wd1, bd1, wd2, bd2 = raw
    S = samples
    w1t = jnp.transpose(w1_full[:, :, 0])                               # (C, 10)
    b1 = b1_full.reshape(1, OC1)
    # w2m[k*10 + i, o] = w2_full[o, i, k]   (matches col[t, k*10+i] = y1pad[t+k, i])
    w2m = jnp.transpose(w2_full, (2, 1, 0)).reshape(CONV2_K * OC1, OC2)  # (130, 50)
    b2 = b2_full.reshape(1, OC2)
    # w3flat[t*50 + o, j] = wd1[j, o*S + t]  -> flatten order used by the kernel
    w3flat = jnp.transpose(wd1.reshape(HID, OC2, S), (2, 1, 0)).reshape(S * OC2, HID)
    w3flat = jnp.pad(w3flat, ((0, 0), (0, HID_PAD - HID)))               # (50*S, 128)
    bd1p = jnp.pad(bd1, (0, HID_PAD - HID)).reshape(1, HID_PAD)          # (1, 128)
    wd2p = jnp.pad(jnp.transpose(wd2), ((0, HID_PAD - HID), (0, 0)))     # (128, 2)
    bd2p = bd2.reshape(1, 2)
    return (w1t, b1, w2m, b2, w3flat, bd1p, wd2p, bd2p)


def ref_forward(x, raw):
    """Independent pure-JAX reference of the PyTorch forward (NCW convs)."""
    w1_full, b1_full, w2_full, b2_full, wd1, bd1, wd2, bd2 = raw
    xt = jnp.transpose(x, (0, 2, 1))                                     # (B, C, S)
    dn = ('NCH', 'OIH', 'NCH')
    y = lax.conv_general_dilated(xt, w1_full, (1,), 'SAME', dimension_numbers=dn,
                                 precision=lax.Precision.HIGHEST)
    y = _scaled_tanh(y + b1_full[None, :, None])
    y = lax.conv_general_dilated(y, w2_full, (1,), 'SAME', dimension_numbers=dn,
                                 precision=lax.Precision.HIGHEST)
    y = _scaled_tanh(y + b2_full[None, :, None])
    flat = y.reshape(y.shape[0], -1)                                     # channel-major flatten
    h = 1.0 / (1.0 + jnp.exp(-(jnp.dot(flat, wd1.T, precision=lax.Precision.HIGHEST)
                               + bd1[None, :])))
    return 1.0 / (1.0 + jnp.exp(-(jnp.dot(h, wd2.T, precision=lax.Precision.HIGHEST)
                                  + bd2[None, :])))


if __name__ == "__main__":
    B, CHANS, SAMPLES = 2, 4, 16                                         # small synthetic shapes
    key = jax.random.PRNGKey(0)
    kx, kp = jax.random.split(key)
    x = jax.random.normal(kx, (B, SAMPLES, CHANS), jnp.float32)          # (B, Samples, Chans)

    raw = init_params(kp, CHANS, SAMPLES)
    kernel_params = pack_params_for_kernel(raw, SAMPLES)

    out = cnn1_forward(x, kernel_params)
    out = jax.block_until_ready(out)

    ref = ref_forward(x, raw)
    np.testing.assert_allclose(np.asarray(out), np.asarray(ref), rtol=5e-3, atol=5e-3)
    assert out.shape == (B, 2)
    print("KERNEL_OK")
</pallas_src>

<mosaic_0001>
module attributes {stable_mosaic.version = 11 : i64} {
  func.func @conv_kernel(%arg0: i32, %arg1: memref<2x16x4xf32, #tpu.memory_space<vmem>>, %arg2: memref<4x10xf32, #tpu.memory_space<vmem>>, %arg3: memref<1x10xf32, #tpu.memory_space<vmem>>, %arg4: memref<130x50xf32, #tpu.memory_space<vmem>>, %arg5: memref<1x50xf32, #tpu.memory_space<vmem>>, %arg6: memref<32x50xf32, #tpu.memory_space<vmem>>, %arg7: memref<32x130xf32, #tpu.memory_space<vmem>>) attributes {dimension_semantics = [#tpu.dimension_semantics<parallel>], iteration_bounds = array<i64: 1>, scalar_prefetch = 0 : i64, scratch_operands = 1 : i64, tpu.core_type = #tpu.core_type<tc>, window_params = [{transform_indices = @transform_0, window_bounds = array<i64: 2, 16, 4>}, {pipeline_mode = #tpu.pipeline_mode<synchronous>, transform_indices = @transform_1, window_bounds = array<i64: 4, 10>}, {pipeline_mode = #tpu.pipeline_mode<synchronous>, transform_indices = @transform_2, window_bounds = array<i64: 1, 10>}, {pipeline_mode = #tpu.pipeline_mode<synchronous>, transform_indices = @transform_3, window_bounds = array<i64: 130, 50>}, {pipeline_mode = #tpu.pipeline_mode<synchronous>, transform_indices = @transform_4, window_bounds = array<i64: 1, 50>}, {transform_indices = @transform_5, window_bounds = array<i64: 32, 50>}]} {
    %c0 = arith.constant 0 : index
    %c0_0 = arith.constant 0 : index
    %0 = vector.load %arg2[%c0, %c0_0] : memref<4x10xf32, #tpu.memory_space<vmem>>, vector<4x10xf32>
    %c0_1 = arith.constant 0 : index
    %c0_2 = arith.constant 0 : index
    %1 = vector.load %arg3[%c0_1, %c0_2] : memref<1x10xf32, #tpu.memory_space<vmem>>, vector<1x10xf32>
    %cst = arith.constant 0.000000e+00 : f32
    %2 = vector.broadcast %cst : f32 to vector<6x10xf32>
    %c0_3 = arith.constant 0 : index
    %c0_4 = arith.constant 0 : index
    %c0_5 = arith.constant 0 : index
    %3 = vector.load %arg1[%c0_3, %c0_4, %c0_5] : memref<2x16x4xf32, #tpu.memory_space<vmem>>, vector<1x16x4xf32>
    %4 = vector.shape_cast %3 : vector<1x16x4xf32> to vector<16x4xf32>
    %cst_6 = arith.constant dense<0.000000e+00> : vector<16x10xf32>
    %5 = tpu.matmul %4, %0, %cst_6 {dimension_numbers = #tpu.dot_dimension_numbers<[1], [0], [0], [1], [0, 0, 1, 1], [], []>} : vector<16x4xf32>, vector<4x10xf32>, vector<16x10xf32> -> vector<16x10xf32>
    %6 = vector.broadcast %1 : vector<1x10xf32> to vector<16x10xf32>
    %7 = arith.addf %5, %6 : vector<16x10xf32>
    %cst_7 = arith.constant 0.666666686 : f32
    %8 = vector.broadcast %cst_7 : f32 to vector<16x10xf32>
    %9 = arith.mulf %8, %7 : vector<16x10xf32>
    %10 = math.tanh %9 : vector<16x10xf32>
    %cst_8 = arith.constant 1.715900e+00 : f32
    %11 = vector.broadcast %cst_8 : f32 to vector<16x10xf32>
    %12 = arith.mulf %11, %10 : vector<16x10xf32>
    %13 = tpu.concatenate %2, %12, %2 in 0 : vector<6x10xf32>, vector<16x10xf32>, vector<6x10xf32> -> vector<28x10xf32>
    %14 = vector.extract_strided_slice %13 {offsets = [0, 0], sizes = [16, 10], strides = [1, 1]} : vector<28x10xf32> to vector<16x10xf32>
    %15 = vector.extract_strided_slice %13 {offsets = [1, 0], sizes = [16, 10], strides = [1, 1]} : vector<28x10xf32> to vector<16x10xf32>
    %16 = vector.extract_strided_slice %13 {offsets = [2, 0], sizes = [16, 10], strides = [1, 1]} : vector<28x10xf32> to vector<16x10xf32>
    %17 = vector.extract_strided_slice %13 {offsets = [3, 0], sizes = [16, 10], strides = [1, 1]} : vector<28x10xf32> to vector<16x10xf32>
    %18 = vector.extract_strided_slice %13 {offsets = [4, 0], sizes = [16, 10], strides = [1, 1]} : vector<28x10xf32> to vector<16x10xf32>
    %19 = vector.extract_strided_slice %13 {offsets = [5, 0], sizes = [16, 10], strides = [1, 1]} : vector<28x10xf32> to vector<16x10xf32>
    %20 = vector.extract_strided_slice %13 {offsets = [6, 0], sizes = [16, 10], strides = [1, 1]} : vector<28x10xf32> to vector<16x10xf32>
    %21 = vector.extract_strided_slice %13 {offsets = [7, 0], sizes = [16, 10], strides = [1, 1]} : vector<28x10xf32> to vector<16x10xf32>
    %22 = vector.extract_strided_slice %13 {offsets = [8, 0], sizes = [16, 10], strides = [1, 1]} : vector<28x10xf32> to vector<16x10xf32>
    %23 = vector.extract_strided_slice %13 {offsets = [9, 0], sizes = [16, 10], strides = [1, 1]} : vector<28x10xf32> to vector<16x10xf32>
    %24 = vector.extract_strided_slice %13 {offsets = [10, 0], sizes = [16, 10], strides = [1, 1]} : vector<28x10xf32> to vector<16x10xf32>
    %25 = vector.extract_strided_slice %13 {offsets = [11, 0], sizes = [16, 10], strides = [1, 1]} : vector<28x10xf32> to vector<16x10xf32>
    %26 = vector.extract_strided_slice %13 {offsets = [12, 0], sizes = [16, 10], strides = [1, 1]} : vector<28x10xf32> to vector<16x10xf32>
    %27 = tpu.concatenate %14, %15, %16, %17, %18, %19, %20, %21, %22, %23, %24, %25, %26 in 1 : vector<16x10xf32>, vector<16x10xf32>, vector<16x10xf32>, vector<16x10xf32>, vector<16x10xf32>, vector<16x10xf32>, vector<16x10xf32>, vector<16x10xf32>, vector<16x10xf32>, vector<16x10xf32>, vector<16x10xf32>, vector<16x10xf32>, vector<16x10xf32> -> vector<16x130xf32>
    %c0_9 = arith.constant 0 : index
    %c0_10 = arith.constant 0 : index
    %28 = vector.load %arg7[%c0_9, %c0_10] : memref<32x130xf32, #tpu.memory_space<vmem>>, vector<16x130xf32>
    tpu.vector_store %arg7[%c0_9, %c0_10], %27 {strides = array<i32>} : memref<32x130xf32, #tpu.memory_space<vmem>>, vector<16x130xf32>,
    %c1 = arith.constant 1 : index
    %c0_11 = arith.constant 0 : index
    %c0_12 = arith.constant 0 : index
    %29 = vector.load %arg1[%c1, %c0_11, %c0_12] : memref<2x16x4xf32, #tpu.memory_space<vmem>>, vector<1x16x4xf32>
    %30 = vector.shape_cast %29 : vector<1x16x4xf32> to vector<16x4xf32>
    %cst_13 = arith.constant dense<0.000000e+00> : vector<16x10xf32>
    %31 = tpu.matmul %30, %0, %cst_13 {dimension_numbers = #tpu.dot_dimension_numbers<[1], [0], [0], [1], [0, 0, 1, 1], [], []>} : vector<16x4xf32>, vector<4x10xf32>, vector<16x10xf32> -> vector<16x10xf32>
    %32 = vector.broadcast %1 : vector<1x10xf32> to vector<16x10xf32>
    %33 = arith.addf %31, %32 : vector<16x10xf32>
    %cst_14 = arith.constant 0.666666686 : f32
    %34 = vector.broadcast %cst_14 : f32 to vector<16x10xf32>
    %35 = arith.mulf %34, %33 : vector<16x10xf32>
    %36 = math.tanh %35 : vector<16x10xf32>
    %cst_15 = arith.constant 1.715900e+00 : f32
    %37 = vector.broadcast %cst_15 : f32 to vector<16x10xf32>
    %38 = arith.mulf %37, %36 : vector<16x10xf32>
    %39 = tpu.concatenate %2, %38, %2 in 0 : vector<6x10xf32>, vector<16x10xf32>, vector<6x10xf32> -> vector<28x10xf32>
    %40 = vector.extract_strided_slice %39 {offsets = [0, 0], sizes = [16, 10], strides = [1, 1]} : vector<28x10xf32> to vector<16x10xf32>
    %41 = vector.extract_strided_slice %39 {offsets = [1, 0], sizes = [16, 10], strides = [1, 1]} : vector<28x10xf32> to vector<16x10xf32>
    %42 = vector.extract_strided_slice %39 {offsets = [2, 0], sizes = [16, 10], strides = [1, 1]} : vector<28x10xf32> to vector<16x10xf32>
    %43 = vector.extract_strided_slice %39 {offsets = [3, 0], sizes = [16, 10], strides = [1, 1]} : vector<28x10xf32> to vector<16x10xf32>
    %44 = vector.extract_strided_slice %39 {offsets = [4, 0], sizes = [16, 10], strides = [1, 1]} : vector<28x10xf32> to vector<16x10xf32>
    %45 = vector.extract_strided_slice %39 {offsets = [5, 0], sizes = [16, 10], strides = [1, 1]} : vector<28x10xf32> to vector<16x10xf32>
    %46 = vector.extract_strided_slice %39 {offsets = [6, 0], sizes = [16, 10], strides = [1, 1]} : vector<28x10xf32> to vector<16x10xf32>
    %47 = vector.extract_strided_slice %39 {offsets = [7, 0], sizes = [16, 10], strides = [1, 1]} : vector<28x10xf32> to vector<16x10xf32>
    %48 = vector.extract_strided_slice %39 {offsets = [8, 0], sizes = [16, 10], strides = [1, 1]} : vector<28x10xf32> to vector<16x10xf32>
    %49 = vector.extract_strided_slice %39 {offsets = [9, 0], sizes = [16, 10], strides = [1, 1]} : vector<28x10xf32> to vector<16x10xf32>
    %50 = vector.extract_strided_slice %39 {offsets = [10, 0], sizes = [16, 10], strides = [1, 1]} : vector<28x10xf32> to vector<16x10xf32>
    %51 = vector.extract_strided_slice %39 {offsets = [11, 0], sizes = [16, 10], strides = [1, 1]} : vector<28x10xf32> to vector<16x10xf32>
    %52 = vector.extract_strided_slice %39 {offsets = [12, 0], sizes = [16, 10], strides = [1, 1]} : vector<28x10xf32> to vector<16x10xf32>
    %53 = tpu.concatenate %40, %41, %42, %43, %44, %45, %46, %47, %48, %49, %50, %51, %52 in 1 : vector<16x10xf32>, vector<16x10xf32>, vector<16x10xf32>, vector<16x10xf32>, vector<16x10xf32>, vector<16x10xf32>, vector<16x10xf32>, vector<16x10xf32>, vector<16x10xf32>, vector<16x10xf32>, vector<16x10xf32>, vector<16x10xf32>, vector<16x10xf32> -> vector<16x130xf32>
    %c16 = arith.constant 16 : index
    %c0_16 = arith.constant 0 : index
    %54 = vector.load %arg7[%c16, %c0_16] : memref<32x130xf32, #tpu.memory_space<vmem>>, vector<16x130xf32>
    tpu.vector_store %arg7[%c16, %c0_16], %53 {strides = array<i32>} : memref<32x130xf32, #tpu.memory_space<vmem>>, vector<16x130xf32>,
    %c0_17 = arith.constant 0 : index
    %c0_18 = arith.constant 0 : index
    %55 = vector.load %arg7[%c0_17, %c0_18] : memref<32x130xf32, #tpu.memory_space<vmem>>, vector<32x130xf32>
    %c0_19 = arith.constant 0 : index
    %c0_20 = arith.constant 0 : index
    %56 = vector.load %arg4[%c0_19, %c0_20] : memref<130x50xf32, #tpu.memory_space<vmem>>, vector<130x50xf32>
    %cst_21 = arith.constant dense<0.000000e+00> : vector<32x50xf32>
    %57 = tpu.matmul %55, %56, %cst_21 {dimension_numbers = #tpu.dot_dimension_numbers<[1], [0], [0], [1], [0, 0, 1, 1], [], []>} : vector<32x130xf32>, vector<130x50xf32>, vector<32x50xf32> -> vector<32x50xf32>
    %c0_22 = arith.constant 0 : index
    %c0_23 = arith.constant 0 : index
    %58 = vector.load %arg5[%c0_22, %c0_23] : memref<1x50xf32, #tpu.memory_space<vmem>>, vector<1x50xf32>
    %59 = vector.broadcast %58 : vector<1x50xf32> to vector<32x50xf32>
    %60 = arith.addf %57, %59 : vector<32x50xf32>
    %cst_24 = arith.constant 0.666666686 : f32
    %61 = vector.broadcast %cst_24 : f32 to vector<32x50xf32>
    %62 = arith.mulf %61, %60 : vector<32x50xf32>
    %63 = math.tanh %62 : vector<32x50xf32>
    %cst_25 = arith.constant 1.715900e+00 : f32
    %64 = vector.broadcast %cst_25 : f32 to vector<32x50xf32>
    %65 = arith.mulf %64, %63 : vector<32x50xf32>
    %c0_26 = arith.constant 0 : index
    %c0_27 = arith.constant 0 : index
    %66 = vector.load %arg6[%c0_26, %c0_27] : memref<32x50xf32, #tpu.memory_space<vmem>>, vector<32x50xf32>
    tpu.vector_store %arg6[%c0_26, %c0_27], %65 {strides = array<i32>} : memref<32x50xf32, #tpu.memory_space<vmem>>, vector<32x50xf32>,
    return
  }
  func.func @transform_0(%arg0: i32) -> (i32, i32, i32) {
    %c0_i32 = arith.constant 0 : i32
    %c0_i32_0 = arith.constant 0 : i32
    %c0_i32_1 = arith.constant 0 : i32
    return %arg0, %c0_i32, %c0_i32_0 : i32, i32, i32
  }
  func.func @transform_1(%arg0: i32) -> (i32, i32) {
    %c0_i32 = arith.constant 0 : i32
    %c0_i32_0 = arith.constant 0 : i32
    %c0_i32_1 = arith.constant 0 : i32
    return %c0_i32, %c0_i32_0 : i32, i32
  }
  func.func @transform_2(%arg0: i32) -> (i32, i32) {
    %c0_i32 = arith.constant 0 : i32
    %c0_i32_0 = arith.constant 0 : i32
    %c0_i32_1 = arith.constant 0 : i32
    return %c0_i32, %c0_i32_0 : i32, i32
  }
  func.func @transform_3(%arg0: i32) -> (i32, i32) {
    %c0_i32 = arith.constant 0 : i32
    %c0_i32_0 = arith.constant 0 : i32
    %c0_i32_1 = arith.constant 0 : i32
    return %c0_i32, %c0_i32_0 : i32, i32
  }
  func.func @transform_4(%arg0: i32) -> (i32, i32) {
    %c0_i32 = arith.constant 0 : i32
    %c0_i32_0 = arith.constant 0 : i32
    %c0_i32_1 = arith.constant 0 : i32
    return %c0_i32, %c0_i32_0 : i32, i32
  }
  func.func @transform_5(%arg0: i32) -> (i32, i32) {
    %c0_i32 = arith.constant 0 : i32
    %c0_i32_0 = arith.constant 0 : i32
    return %arg0, %c0_i32 : i32, i32
  }
}

</mosaic_0001>

<llo_original>
// kernel: tpu_custom_call.1
$region0: #{tpu_custom_call.1}
  #allocation0 [shape = 'u32[]', space=smem, size = 0x4, offset = 0x4, fixed_abs, tag = 'smem constant byte address 0x4 - core index']
  #allocation1 [shape = 'u32[72,128]{1,0:T(1,128)}', space=vmem, size = 0x9000, scoped, tag = 'internal scratch']
  #allocation2 [shape = 'f32[32,130]{1,0:T(8,128)}', space=vmem, size = 0x8000, scoped, tag = 'scratch operand']
  %s0 = inlined_call_operand.vmem [shape: f32[2,16,4], index: 0, kind: input, shape index: {}]
  %s1 = inlined_call_operand.vmem [shape: f32[4,10], index: 1, kind: input, shape index: {}]
  %s2 = inlined_call_operand.vmem [shape: f32[1,10], index: 2, kind: input, shape index: {}]
  %s3 = inlined_call_operand.vmem [shape: f32[130,50], index: 3, kind: input, shape index: {}]
  %s4 = inlined_call_operand.vmem [shape: f32[1,50], index: 4, kind: input, shape index: {}]
  %s5 = inlined_call_operand.hbm [shape: f32[32,50], index: 5, kind: output, shape index: {}]
  %s6 = sld [smem:[#allocation0]]
  $region30: #{tpu_custom_call.1} parent=0
    _
  %s8 = ssub.s32 1, %s6
  %s9 = scalar_select 0, %s8, %s6
  $region1: #{tpu_custom_call.1} parent=0
    #allocation3 [shape = 'u8[16384]{0}', space=vmem, size = 0x4000, scoped, tag = 'output window, operand 0, single buffered']
    #allocation4 [shape = 's32[1]{0}', space=sflag, size = 0x4, scoped, tag = 'scoped memory for tpu_custom_call.1']
    %10 = vsyncpa [#allocation4], 0
    // Predicated region
    $region2: #{tpu_custom_call.1} parent=1 // pred_check
      _
    $region3: #{tpu_custom_call.1} parent=1 // pred_check_branch
      %12 = sbr.rel (0) target = $region5
    $region4: #{tpu_custom_call.1} parent=1 // pred_region
      _
    $region5: #{tpu_custom_call.1} parent=1 // pred_fallthru
      _
    // Predicated region
    $region6: #{tpu_custom_call.1} parent=1 // pred_check
      _
    $region7: #{tpu_custom_call.1} parent=1 // pred_check_branch
      %14 = sbr.rel (0) target = $region9
    $region8: #{tpu_custom_call.1} parent=1 // pred_region
      _
    $region9: #{tpu_custom_call.1} parent=1 // pred_fallthru
      _
    // Predicated region
    $region10: #{tpu_custom_call.1} parent=1 // pred_check
      _
    $region11: #{tpu_custom_call.1} parent=1 // pred_check_branch
      %16 = sbr.rel (0) target = $region13
    $region12: #{tpu_custom_call.1} parent=1 // pred_region
      _
    $region13: #{tpu_custom_call.1} parent=1 // pred_fallthru
      _
    // Predicated region
    $region14: #{tpu_custom_call.1} parent=1 // pred_check
      _
    $region15: #{tpu_custom_call.1} parent=1 // pred_check_branch
      %18 = sbr.rel (0) target = $region17
    $region16: #{tpu_custom_call.1} parent=1 // pred_region
      _
    $region17: #{tpu_custom_call.1} parent=1 // pred_fallthru
      _
    // Predicated region
    $region18: #{tpu_custom_call.1} parent=1 // pred_check
      _
    $region19: #{tpu_custom_call.1} parent=1 // pred_check_branch
      %20 = sbr.rel (0) target = $region21
    $region20: #{tpu_custom_call.1} parent=1 // pred_region
      _
    $region21: #{tpu_custom_call.1} parent=1 // pred_fallthru
      _
    %v21 = vld [vmem:[%s1] sm:$0xf]
    %v22 = vld [vmem:[%s2] sm:$0x1]
    %v23 = vld [vmem:[%s0] sm:$0xff]
    %v24 = vld [vmem:[%s0 + $0x8] sm:$0xff]
    %v26 = vperm.slane %v22, 0
    %vm28 = vcmask 31744
    %v30 = vsel %vm28, %v23, 0
    %v33 = vsel %vm28, %v24, 0
    %vm35 = vcmask 1043456
    %v37 = vsel %vm35, %v21, 0
    %39 = vmatpush.msra.mxu0 0.0
    %40 = vmatpush.msra.mxu0 0.0
    %41 = vmatpush.msra.mxu0 0.0
    %42 = vmatpush.msra.mxu0 0.0
    %43 = vmatpush.msra.mxu0 0.0
    %44 = vmatpush.msra.mxu0 0.0
    %45 = vmatpush.msra.mxu0 0.0
    %46 = vmatpush.msra.mxu0 0.0
    %47 = vmatpush.msra.mxu0 0.0
    %48 = vmatpush.msra.mxu0 0.0
    %49 = vmatpush.msra.mxu0 0.0
    %50 = vmatpush.msra.mxu0 0.0
    %51 = vmatpush.msra.mxu0 0.0
    %52 = vmatpush.msra.mxu0 0.0
    %53 = vmatpush.msra.mxu0 0.0
    %54 = vmatpush.msra.mxu0 %v37
    %55 = vmatmul.f32.gmra.mxu0 %v30
    %v56 = vpop.f32.mrf.mxu0
    %v57 = vadd.f32 %v26, %v56
    %58 = vmatmul.f32.gmra.mxu0 %v33
    %v59 = vpop.f32.mrf.mxu0
    %v60 = vadd.f32 %v26, %v59
    %61 = vdwg.mxu0
    %v62 = vmul.f32 %v57, 0.6666667
    %v63 = vmul.f32 %v60, 0.6666667
    %v64 = vtanh.pop %v62
    %v65 = vtanh.pop %v63
    %v66 = vmul.f32 %v64, 1.7159
    %v67 = vmul.f32 %v65, 1.7159
    %vm70 = vcmask 1045504
    %v71 = vrot.slane %v66, 2
    %v72 = vrot.slane %v67, 2
    %v73 = vsel %vm70, %v71, %v72
    %v77 = vsel %vm70, 0.0, %v71
    %v78 = vsel %vm70, %v72, 0.0
    %vm81 = vcmask 1046528
    %v82 = vrot.slane %v77, 1
    %v83 = vrot.slane %v73, 1
    %v84 = vsel %vm81, %v82, %v83
    %v85 = vrot.slane %v78, 1
    %v86 = vsel %vm81, %v83, %v85
    %87 = vrot.lane.b32.xlu0 %v84, 10
    %v88 = vpop.permute.xlu0 %87
    %89 = vrot.lane.b32.xlu0 %v86, 10
    %v90 = vpop.permute.xlu0 %89
    %v93 = vrot.slane %v77, 2
    %v94 = vrot.slane %v73, 2
    %v95 = vsel %vm70, %v93, %v94
    %v96 = vrot.slane %v78, 2
    %v97 = vsel %vm70, %v94, %v96
    %98 = vrot.lane.b32.xlu0 %v95, 20
    %v99 = vpop.permute.xlu0 %98
    %100 = vrot.lane.b32.xlu0 %v97, 20
    %v101 = vpop.permute.xlu0 %100
    %vm104 = vcmask 1044480
    %v105 = vrot.slane %v77, 3
    %v106 = vrot.slane %v73, 3
    %v107 = vsel %vm104, %v105, %v106
    %v108 = vrot.slane %v78, 3
    %v109 = vsel %vm104, %v106, %v108
    %110 = vrot.lane.b32.xlu0 %v107, 30
    %v111 = vpop.permute.xlu0 %110
    %112 = vrot.lane.b32.xlu0 %v109, 30
    %v113 = vpop.permute.xlu0 %112
    %v116 = vrot.slane %v77, 4
    %v117 = vrot.slane %v73, 4
    %v118 = vsel %vm35, %v116, %v117
    %v119 = vrot.slane %v78, 4
    %v120 = vsel %vm35, %v117, %v119
    %121 = vrot.lane.b32.xlu0 %v118, 40
    %v122 = vpop.permute.xlu0 %121
    %123 = vrot.lane.b32.xlu0 %v120, 40
    %v124 = vpop.permute.xlu0 %123
    %vm127 = vcmask 1042432
    %v128 = vrot.slane %v77, 5
    %v129 = vrot.slane %v73, 5
    %v130 = vsel %vm127, %v128, %v129
    %v131 = vrot.slane %v78, 5
    %v132 = vsel %vm127, %v129, %v131
    %133 = vrot.lane.b32.xlu0 %v130, 50
    %v134 = vpop.permute.xlu0 %133
    %135 = vrot.lane.b32.xlu0 %v132, 50
    %v136 = vpop.permute.xlu0 %135
    %vm139 = vcmask 1041408
    %v140 = vrot.slane %v77, 6
    %v141 = vrot.slane %v73, 6
    %v142 = vsel %vm139, %v140, %v141
    %v143 = vrot.slane %v78, 6
    %v144 = vsel %vm139, %v141, %v143
    %145 = vrot.lane.b32.xlu0 %v142, 60
    %v146 = vpop.permute.xlu0 %145
    %147 = vrot.lane.b32.xlu0 %v144, 60
    %v148 = vpop.permute.xlu0 %147
    %vm151 = vcmask 1040384
    %v152 = vrot.slane %v77, 7
    %v153 = vrot.slane %v73, 7
    %v154 = vsel %vm151, %v152, %v153
    %v155 = vrot.slane %v78, 7
    %v156 = vsel %vm151, %v153, %v155
    %157 = vrot.lane.b32.xlu0 %v154, 70
    %v158 = vpop.permute.xlu0 %157
    %159 = vrot.lane.b32.xlu0 %v156, 70
    %v160 = vpop.permute.xlu0 %159
    %163 = vrot.lane.b32.xlu0 %v73, 80
    %v164 = vpop.permute.xlu0 %163
    %165 = vrot.lane.b32.xlu0 %v78, 80
    %v166 = vpop.permute.xlu0 %165
    %v170 = vrot.slane 0.0, 1
    %v171 = vsel %vm81, %v85, %v170
    %172 = vrot.lane.b32.xlu0 %v86, 90
    %v173 = vpop.permute.xlu0 %172
    %174 = vrot.lane.b32.xlu0 %v171, 90
    %v175 = vpop.permute.xlu0 %174
    %v178 = vrot.slane 0.0, 2
    %v179 = vsel %vm70, %v96, %v178
    %180 = vrot.lane.b32.xlu0 %v97, 100
    %v181 = vpop.permute.xlu0 %180
    %182 = vrot.lane.b32.xlu0 %v179, 100
    %v183 = vpop.permute.xlu0 %182
    %v186 = vrot.slane 0.0, 3
    %v187 = vsel %vm104, %v108, %v186
    %188 = vrot.lane.b32.xlu0 %v109, 110
    %v189 = vpop.permute.xlu0 %188
    %190 = vrot.lane.b32.xlu0 %v187, 110
    %v191 = vpop.permute.xlu0 %190
    %v194 = vrot.slane 0.0, 4
    %v195 = vsel %vm35, %v119, %v194
    %196 = vrot.lane.b32.xlu0 %v120, 120
    %v197 = vpop.permute.xlu0 %196
    %198 = vrot.lane.b32.xlu0 %v195, 120
    %v199 = vpop.permute.xlu0 %198
    %vm202 = vcmask 80896
    %v203 = vsel %vm202, %v77, %v88
    %v204 = vsel %vm202, %v73, %v90
    %vm205 = vcmask 162816
    %v206 = vsel %vm205, %v203, %v99
    %v207 = vsel %vm205, %v204, %v101
    %vm208 = vcmask 244736
    %v209 = vsel %vm208, %v206, %v111
    %v210 = vsel %vm208, %v207, %v113
    %vm211 = vcmask 326656
    %v212 = vsel %vm211, %v209, %v122
    %v213 = vsel %vm211, %v210, %v124
    %vm214 = vcmask 408576
    %v215 = vsel %vm214, %v212, %v134
    %v216 = vsel %vm214, %v213, %v136
    %vm217 = vcmask 490496
    %v218 = vsel %vm217, %v215, %v146
    %v219 = vsel %vm217, %v216, %v148
    %vm220 = vcmask 572416
    %v221 = vsel %vm220, %v218, %v158
    %v222 = vsel %vm220, %v219, %v160
    %vm223 = vcmask 654336
    %v224 = vsel %vm223, %v221, %v164
    %v225 = vsel %vm223, %v222, %v166
    %vm226 = vcmask 736256
    %v227 = vsel %vm226, %v224, %v173
    %v228 = vsel %vm226, %v225, %v175
    %vm229 = vcmask 818176
    %v230 = vsel %vm229, %v227, %v181
    %v231 = vsel %vm229, %v228, %v183
    %vm232 = vcmask 900096
    %v233 = vsel %vm232, %v230, %v189
    %v234 = vsel %vm232, %v231, %v191
    %vm235 = vcmask 982016
    %v236 = vsel %vm235, %v233, %v197
    %v237 = vsel %vm235, %v234, %v199
    %238 = vst [vmem:[#allocation2] sm:$0xff] %v236
    %vm239 = vcmask 15360
    %240 = vst.msk [vmem:[#allocation2 + $0x8] sm:$0xff] %vm239, %v197
    %241 = vst [vmem:[#allocation2 + $0x10] sm:$0xff] %v237
    %242 = vst.msk [vmem:[#allocation2 + $0x18] sm:$0xff] %vm239, %v199
    %s243 = scalar_lea.vmem %s0, 16
    %v244 = vld [vmem:[%s243] sm:$0xff]
    %v245 = vld [vmem:[%s243 + $0x8] sm:$0xff]
    %v247 = vsel %vm28, %v244, 0
    %v250 = vsel %vm28, %v245, 0
    %252 = vmatpush.msra.mxu0 0.0
    %253 = vmatpush.msra.mxu0 0.0
    %254 = vmatpush.msra.mxu0 0.0
    %255 = vmatpush.msra.mxu0 0.0
    %256 = vmatpush.msra.mxu0 0.0
    %257 = vmatpush.msra.mxu0 0.0
    %258 = vmatpush.msra.mxu0 0.0
    %259 = vmatpush.msra.mxu0 0.0
    %260 = vmatpush.msra.mxu0 0.0
    %261 = vmatpush.msra.mxu0 0.0
    %262 = vmatpush.msra.mxu0 0.0
    %263 = vmatpush.msra.mxu0 0.0
    %264 = vmatpush.msra.mxu0 0.0
    %265 = vmatpush.msra.mxu0 0.0
    %266 = vmatpush.msra.mxu0 0.0
    %267 = vmatpush.msra.mxu0 %v37
    %268 = vmatmul.f32.gmra.mxu0 %v247
    %v269 = vpop.f32.mrf.mxu0
    %v270 = vadd.f32 %v26, %v269
    %271 = vmatmul.f32.gmra.mxu0 %v250
    %v272 = vpop.f32.mrf.mxu0
    %v273 = vadd.f32 %v26, %v272
    %274 = vdwg.mxu0
    %v275 = vmul.f32 %v270, 0.6666667
    %v276 = vmul.f32 %v273, 0.6666667
    %v277 = vtanh.pop %v275
    %v278 = vtanh.pop %v276
    %v279 = vmul.f32 %v277, 1.7159
    %v280 = vmul.f32 %v278, 1.7159
    %v283 = vrot.slane %v279, 2
    %v284 = vrot.slane %v280, 2
    %v285 = vsel %vm70, %v283, %v284
    %v289 = vsel %vm70, 0.0, %v283
    %v290 = vsel %vm70, %v284, 0.0
    %v293 = vrot.slane %v289, 1
    %v294 = vrot.slane %v285, 1
    %v295 = vsel %vm81, %v293, %v294
    %v296 = vrot.slane %v290, 1
    %v297 = vsel %vm81, %v294, %v296
    %298 = vrot.lane.b32.xlu0 %v295, 10
    %v299 = vpop.permute.xlu0 %298
    %300 = vrot.lane.b32.xlu0 %v297, 10
    %v301 = vpop.permute.xlu0 %300
    %v304 = vrot.slane %v289, 2
    %v305 = vrot.slane %v285, 2
    %v306 = vsel %vm70, %v304, %v305
    %v307 = vrot.slane %v290, 2
    %v308 = vsel %vm70, %v305, %v307
    %309 = vrot.lane.b32.xlu0 %v306, 20
    %v310 = vpop.permute.xlu0 %309
    %311 = vrot.lane.b32.xlu0 %v308, 20
    %v312 = vpop.permute.xlu0 %311
    %v315 = vrot.slane %v289, 3
    %v316 = vrot.slane %v285, 3
    %v317 = vsel %vm104, %v315, %v316
    %v318 = vrot.slane %v290, 3
    %v319 = vsel %vm104, %v316, %v318
    %320 = vrot.lane.b32.xlu0 %v317, 30
    %v321 = vpop.permute.xlu0 %320
    %322 = vrot.lane.b32.xlu0 %v319, 30
    %v323 = vpop.permute.xlu0 %322
    %v326 = vrot.slane %v289, 4
    %v327 = vrot.slane %v285, 4
    %v328 = vsel %vm35, %v326, %v327
    %v329 = vrot.slane %v290, 4
    %v330 = vsel %vm35, %v327, %v329
    %331 = vrot.lane.b32.xlu0 %v328, 40
    %v332 = vpop.permute.xlu0 %331
    %333 = vrot.lane.b32.xlu0 %v330, 40
    %v334 = vpop.permute.xlu0 %333
    %v337 = vrot.slane %v289, 5
    %v338 = vrot.slane %v285, 5
    %v339 = vsel %vm127, %v337, %v338
    %v340 = vrot.slane %v290, 5
    %v341 = vsel %vm127, %v338, %v340
    %342 = vrot.lane.b32.xlu0 %v339, 50
    %v343 = vpop.permute.xlu0 %342
    %344 = vrot.lane.b32.xlu0 %v341, 50
    %v345 = vpop.permute.xlu0 %344
    %v348 = vrot.slane %v289, 6
    %v349 = vrot.slane %v285, 6
    %v350 = vsel %vm139, %v348, %v349
    %v351 = vrot.slane %v290, 6
    %v352 = vsel %vm139, %v349, %v351
    %353 = vrot.lane.b32.xlu0 %v350, 60
    %v354 = vpop.permute.xlu0 %353
    %355 = vrot.lane.b32.xlu0 %v352, 60
    %v356 = vpop.permute.xlu0 %355
    %v359 = vrot.slane %v289, 7
    %v360 = vrot.slane %v285, 7
    %v361 = vsel %vm151, %v359, %v360
    %v362 = vrot.slane %v290, 7
    %v363 = vsel %vm151, %v360, %v362
    %364 = vrot.lane.b32.xlu0 %v361, 70
    %v365 = vpop.permute.xlu0 %364
    %366 = vrot.lane.b32.xlu0 %v363, 70
    %v367 = vpop.permute.xlu0 %366
    %370 = vrot.lane.b32.xlu0 %v285, 80
    %v371 = vpop.permute.xlu0 %370
    %372 = vrot.lane.b32.xlu0 %v290, 80
    %v373 = vpop.permute.xlu0 %372
    %v376 = vsel %vm81, %v296, %v170
    %377 = vrot.lane.b32.xlu0 %v297, 90
    %v378 = vpop.permute.xlu0 %377
    %379 = vrot.lane.b32.xlu0 %v376, 90
    %v380 = vpop.permute.xlu0 %379
    %v383 = vsel %vm70, %v307, %v178
    %384 = vrot.lane.b32.xlu0 %v308, 100
    %v385 = vpop.permute.xlu0 %384
    %386 = vrot.lane.b32.xlu0 %v383, 100
    %v387 = vpop.permute.xlu0 %386
    %v390 = vsel %vm104, %v318, %v186
    %391 = vrot.lane.b32.xlu0 %v319, 110
    %v392 = vpop.permute.xlu0 %391
    %393 = vrot.lane.b32.xlu0 %v390, 110
    %v394 = vpop.permute.xlu0 %393
    %v397 = vsel %vm35, %v329, %v194
    %398 = vrot.lane.b32.xlu0 %v330, 120
    %v399 = vpop.permute.xlu0 %398
    %400 = vrot.lane.b32.xlu0 %v397, 120
    %v401 = vpop.permute.xlu0 %400
    %v404 = vsel %vm202, %v289, %v299
    %v405 = vsel %vm202, %v285, %v301
    %v406 = vsel %vm205, %v404, %v310
    %v407 = vsel %vm205, %v405, %v312
    %v408 = vsel %vm208, %v406, %v321
    %v409 = vsel %vm208, %v407, %v323
    %v410 = vsel %vm211, %v408, %v332
    %v411 = vsel %vm211, %v409, %v334
    %v412 = vsel %vm214, %v410, %v343
    %v413 = vsel %vm214, %v411, %v345
    %v414 = vsel %vm217, %v412, %v354
    %v415 = vsel %vm217, %v413, %v356
    %v416 = vsel %vm220, %v414, %v365
    %v417 = vsel %vm220, %v415, %v367
    %v418 = vsel %vm223, %v416, %v371
    %v419 = vsel %vm223, %v417, %v373
    %v420 = vsel %vm226, %v418, %v378
    %v421 = vsel %vm226, %v419, %v380
    %v422 = vsel %vm229, %v420, %v385
    %v423 = vsel %vm229, %v421, %v387
    %v424 = vsel %vm232, %v422, %v392
    %v425 = vsel %vm232, %v423, %v394
    %v426 = vsel %vm235, %v424, %v399
    %v427 = vsel %vm235, %v425, %v401
    %428 = vst [vmem:[#allocation2 + $0x20] sm:$0xff] %v426
    %429 = vst.msk [vmem:[#allocation2 + $0x28] sm:$0xff] %vm239, %v399
    %430 = vst [vmem:[#allocation2 + $0x30] sm:$0xff] %v427
    %431 = vst.msk [vmem:[#allocation2 + $0x38] sm:$0xff] %vm239, %v401
    %v432 = vld [vmem:[#allocation2] sm:$0xff]
    %v433 = vld [vmem:[#allocation2 + $0x8] sm:$0xff]
    %v434 = vld [vmem:[#allocation2 + $0x10] sm:$0xff]
    %v435 = vld [vmem:[#allocation2 + $0x18] sm:$0xff]
    %v436 = vld [vmem:[#allocation2 + $0x20] sm:$0xff]
    %v437 = vld [vmem:[#allocation2 + $0x28] sm:$0xff]
    %v438 = vld [vmem:[#allocation2 + $0x30] sm:$0xff]
    %v439 = vld [vmem:[#allocation2 + $0x38] sm:$0xff]
    %v440 = vld [vmem:[%s3] sm:$0xff]
    %v441 = vld [vmem:[%s3 + $0x8] sm:$0xff]
    %v442 = vld [vmem:[%s3 + $0x10] sm:$0xff]
    %v443 = vld [vmem:[%s3 + $0x18] sm:$0xff]
    %v444 = vld [vmem:[%s3 + $0x20] sm:$0xff]
    %v445 = vld [vmem:[%s3 + $0x28] sm:$0xff]
    %v446 = vld [vmem:[%s3 + $0x30] sm:$0xff]
    %v447 = vld [vmem:[%s3 + $0x38] sm:$0xff]
    %v448 = vld [vmem:[%s3 + $0x40] sm:$0xff]
    %v449 = vld [vmem:[%s3 + $0x48] sm:$0xff]
    %v450 = vld [vmem:[%s3 + $0x50] sm:$0xff]
    %v451 = vld [vmem:[%s3 + $0x58] sm:$0xff]
    %v452 = vld [vmem:[%s3 + $0x60] sm:$0xff]
    %v453 = vld [vmem:[%s3 + $0x68] sm:$0xff]
    %v454 = vld [vmem:[%s3 + $0x70] sm:$0xff]
    %v455 = vld [vmem:[%s3 + $0x78] sm:$0xff]
    %v456 = vld [vmem:[%s3 + $0x80] sm:$0x3]
    %v457 = vld [vmem:[%s4] sm:$0x1]
    %v459 = vperm.slane %v457, 0
    %v462 = vsel %vm239, %v433, 0
    %v465 = vsel %vm239, %v435, 0
    %v468 = vsel %vm239, %v437, 0
    %v471 = vsel %vm239, %v439, 0
    %v474 = vsel %vm139, %v456, 0
    %476 = vmatpush.msra.mxu0 %v455
    %477 = vmatpush.msra.mxu0 %v454
    %478 = vmatpush.msra.mxu0 %v453
    %479 = vmatpush.msra.mxu0 %v452
    %480 = vmatpush.msra.mxu0 %v451
    %481 = vmatpush.msra.mxu0 %v450
    %482 = vmatpush.msra.mxu0 %v449
    %483 = vmatpush.msra.mxu0 %v448
    %484 = vmatpush.msra.mxu0 %v447
    %485 = vmatpush.msra.mxu0 %v446
    %486 = vmatpush.msra.mxu0 %v445
    %487 = vmatpush.msra.mxu0 %v444
    %488 = vmatpush.msra.mxu0 %v443
    %489 = vmatpush.msra.mxu0 %v442
    %490 = vmatpush.msra.mxu0 %v441
    %491 = vmatpush.msra.mxu0 %v440
    %492 = vmatmul.f32.gmra.mxu0 %v432
    %v493 = vpop.f32.mrf.mxu0
    %v494 = vadd.f32 %v459, %v493
    %495 = vmatmul.f32.gmra.mxu0 %v434
    %v496 = vpop.f32.mrf.mxu0
    %v497 = vadd.f32 %v459, %v496
    %498 = vmatmul.f32.gmra.mxu0 %v436
    %v499 = vpop.f32.mrf.mxu0
    %v500 = vadd.f32 %v459, %v499
    %501 = vmatmul.f32.gmra.mxu0 %v438
    %v502 = vpop.f32.mrf.mxu0
    %v503 = vadd.f32 %v459, %v502
    %504 = vdwg.mxu0
    %505 = vmatpush.msra.mxu0 0.0
    %506 = vmatpush.msra.mxu0 0.0
    %507 = vmatpush.msra.mxu0 0.0
    %508 = vmatpush.msra.mxu0 0.0
    %509 = vmatpush.msra.mxu0 0.0
    %510 = vmatpush.msra.mxu0 0.0
    %511 = vmatpush.msra.mxu0 0.0
    %512 = vmatpush.msra.mxu0 0.0
    %513 = vmatpush.msra.mxu0 0.0
    %514 = vmatpush.msra.mxu0 0.0
    %515 = vmatpush.msra.mxu0 0.0
    %516 = vmatpush.msra.mxu0 0.0
    %517 = vmatpush.msra.mxu0 0.0
    %518 = vmatpush.msra.mxu0 0.0
    %519 = vmatpush.msra.mxu0 0.0
    %520 = vmatpush.msra.mxu0 %v474
    %521 = vmatmul.f32.gmra.mxu0 %v462
    %v522 = vpop.f32.mrf.mxu0
    %v523 = vadd.f32 %v494, %v522
    %524 = vmatmul.f32.gmra.mxu0 %v465
    %v525 = vpop.f32.mrf.mxu0
    %v526 = vadd.f32 %v497, %v525
    %527 = vmatmul.f32.gmra.mxu0 %v468
    %v528 = vpop.f32.mrf.mxu0
    %v529 = vadd.f32 %v500, %v528
    %530 = vmatmul.f32.gmra.mxu0 %v471
    %v531 = vpop.f32.mrf.mxu0
    %v532 = vadd.f32 %v503, %v531
    %533 = vdwg.mxu0
    %v534 = vmul.f32 %v523, 0.6666667
    %v535 = vmul.f32 %v526, 0.6666667
    %v536 = vmul.f32 %v529, 0.6666667
    %v537 = vmul.f32 %v532, 0.6666667
    %v538 = vtanh.pop %v534
    %v539 = vtanh.pop %v535
    %v540 = vtanh.pop %v536
    %v541 = vtanh.pop %v537
    %v542 = vmul.f32 %v538, 1.7159
    %v543 = vmul.f32 %v539, 1.7159
    %v544 = vmul.f32 %v540, 1.7159
    %v545 = vmul.f32 %v541, 1.7159
    %546 = vst.msk [vmem:[#allocation3] sm:$0xff] %vm214, %v542
    %547 = vst.msk [vmem:[#allocation3 + $0x8] sm:$0xff] %vm214, %v543
    %548 = vst.msk [vmem:[#allocation3 + $0x10] sm:$0xff] %vm214, %v544
    %549 = vst.msk [vmem:[#allocation3 + $0x18] sm:$0xff] %vm214, %v545
    // Predicated region
    $region22: #{tpu_custom_call.1} parent=1 // pred_check
      _
    $region23: #{tpu_custom_call.1} parent=1 // pred_check_branch
      %551 = sbr.rel (0) target = $region25
    $region24: #{tpu_custom_call.1} parent=1 // pred_region
      %553 = vsyncadd [#allocation4], 0
      %s554 = sshll.u32 [#allocation3], 4
      %s555 = int_to_ptr.vmem [resolvable:$true] %s554
      %s556 = sshll.u32 %s5, 4
      %s557 = int_to_ptr.hbm [resolvable:$true] %s556
      %562 = dma.vmem_to_hbm [thread:$0]  %s555, 512, %s557, [#allocation4], 128, 128, 8
    $region25: #{tpu_custom_call.1} parent=1 // pred_fallthru
      _
    // Predicated region
    $region26: #{tpu_custom_call.1} parent=1 // pred_check
      _
    $region27: #{tpu_custom_call.1} parent=1 // pred_check_branch
      %564 = sbr.rel (0) target = $region29
    $region28: #{tpu_custom_call.1} parent=1 // pred_region
      %566 = dma.done [#allocation4], 512
    $region29: #{tpu_custom_call.1} parent=1 // pred_fallthru
      _
    %567 = vsyncpa [#allocation4], 1

</llo_original>
